<compile_context>
chip_gen: v6e
topology: v6e:2x2x1
jax: 0.10.0
libtpu: 0.0.40
codegen_flags: <defaults>
</compile_context>

<pallas_src>
import jax
import jax.numpy as jnp
from jax import lax
from jax.experimental import pallas as pl
from jax.experimental.pallas import tpu as pltpu

HIDDEN = 64


def _round_up(x, m):
    return ((x + m - 1) // m) * m


def _anomaly_mlp_kernel(x_ref, w1_ref, b1_ref, w2_ref, b2_ref, o_ref):
    # Layer 1 on the MXU: (TB, D) @ (D, 64) with f32 accumulation, bias, ReLU.
    h = jnp.dot(x_ref[...], w1_ref[...], preferred_element_type=jnp.float32)
    h = jnp.maximum(h + b1_ref[...], 0.0)
    # Layer 2: contract the hidden dim directly, (1, 64) . (TB, 64) -> (1, TB).
    # The lane-dense output row is produced in-layout by the MXU (no XLU
    # reduce, no relayout of TB scalars).
    y = lax.dot_general(
        w2_ref[...], h,
        dimension_numbers=(((1,), (1,)), ((), ())),
        preferred_element_type=jnp.float32)
    y = y + b2_ref[...]
    # Sigmoid lowers to EUP exp/recip -> rides an otherwise-idle issue slot.
    o_ref[...] = jax.nn.sigmoid(y).astype(o_ref.dtype)


def _vmem_capacity_bytes():
    try:
        return int(pltpu.get_tpu_info().vmem_capacity_bytes)
    except Exception:
        return 64 << 20  # conservative fallback: v7x per-core VMEM


def _is_v7x():
    try:
        kind = jax.devices()[0].device_kind.lower()
    except Exception:
        return False
    return ("v7" in kind) or ("7x" in kind)


def _pick_tb(D, itemsize, vmem_cap):
    """Batch-tile rows: ~2 MiB of logical x per grid step, capped by VMEM."""
    d_lane = _round_up(D, 128)
    # ~2 MiB of useful x per step (large tiles reach ~85% of HBM roofline vs
    # ~30% for tiny tiles; the per-step fixed overhead is ~0.35 us).
    target_rows = max(128, (2 << 20) // max(D * itemsize, 1))
    tb = _round_up(target_rows, 128)
    # Physical (lane/sublane-padded) per-row VMEM cost:
    #   x: 2 pipeline buffers of d_lane f32; h temps: ~2 live (TB,128) f32
    #   copies; out: 2 buffers of an (8, TB)-padded f32 row.
    per_row = 2 * d_lane * itemsize + 2 * 128 * 4 + 2 * 8 * 4
    # Weights counted double-buffered (covers the Buffered(1) fallback) with
    # lane padding: w1 (D,64)->(round_up(D,8),128), small operands -> (8,128).
    fixed = 2 * (_round_up(D, 8) * 128 * 4 + 3 * 8 * 128 * 4) + (1 << 20)
    budget = int(0.45 * vmem_cap)
    max_tb = max(128, ((budget - fixed) // per_row) // 128 * 128)
    return min(tb, max_tb)


def anomaly_detector_forward(x, w1, b1, w2_row, b2, *, tb=None,
                             x_buffer_count=None):
    """Fused MLP forward.

    x: (B, D); w1: (D, 64); b1: (1, 64); w2_row: (1, 64); b2: (1, 1).
    Returns (B, 1) f32, matching the PyTorch module output.  Pass x already in
    bf16 if reduced-precision inputs are desired (no wrapper-side cast).
    """
    B, D = x.shape
    assert w1.shape == (D, HIDDEN) and b1.shape == (1, HIDDEN)
    assert w2_row.shape == (1, HIDDEN) and b2.shape == (1, 1)

    itemsize = x.dtype.itemsize
    vmem_cap = _vmem_capacity_bytes()

    TB = int(tb) if tb is not None else _pick_tb(D, itemsize, vmem_cap)
    if B <= TB:
        # Single tile: every block equals the full array dims, so the (8,128)
        # layout rule is trivially satisfied for any B.
        TB, num_tiles = B, 1
    else:
        # Multiple tiles: TB must be a multiple of 128 so the lane-dense
        # (1, TB) output block satisfies the last-dim rule; Pallas masks the
        # ragged last block's reads/writes (no wrapper-side pad pass).
        TB = _round_up(TB, 128)
        num_tiles = pl.cdiv(B, TB)

    # Generation-aware scoped-VMEM budget (~70% of physical capacity); the
    # data footprint was already capped at ~45% in _pick_tb, leaving headroom
    # for compiler-internal scratch.
    vmem_limit = int(0.7 * vmem_cap)

    # v7x has 2 TensorCores per chip: shard the batch grid across them when
    # there is more than one tile.  Plain "parallel" vs "arbitrary" is a
    # measured near-no-op, so use PARALLEL elsewhere.
    if _is_v7x() and num_tiles >= 2:
        dim_sem = (pltpu.CORE_PARALLEL,)
    else:
        dim_sem = (pltpu.PARALLEL,)

    flops = 2 * B * D * HIDDEN + 2 * B * HIDDEN
    bytes_accessed = (B * D * itemsize
                      + D * HIDDEN * w1.dtype.itemsize
                      + (2 * HIDDEN + 1) * 4
                      + B * 4)

    def _spec(shape, index_map, mode):
        if mode is None:
            return pl.BlockSpec(shape, index_map)
        return pl.BlockSpec(shape, index_map, pipeline_mode=mode)

    def build(weight_mode, x_mode):
        return pl.pallas_call(
            _anomaly_mlp_kernel,
            out_shape=jax.ShapeDtypeStruct((1, B), jnp.float32),
            grid=(num_tiles,),
            in_specs=[
                _spec((TB, D), lambda i: (i, 0), x_mode),            # x: batch-tiled
                _spec((D, HIDDEN), lambda i: (0, 0), weight_mode),   # w1: resident
                _spec((1, HIDDEN), lambda i: (0, 0), weight_mode),   # b1: resident
                _spec((1, HIDDEN), lambda i: (0, 0), weight_mode),   # w2 row: resident
                _spec((1, 1), lambda i: (0, 0), weight_mode),        # b2: resident
            ],
            # Lane-dense output slab: one (1, TB) row per grid step.
            out_specs=pl.BlockSpec((1, TB), lambda i: (0, i)),
            compiler_params=pltpu.CompilerParams(
                dimension_semantics=dim_sem,
                vmem_limit_bytes=vmem_limit,
            ),
            cost_estimate=pl.CostEstimate(
                flops=flops,
                transcendentals=B,
                bytes_accessed=bytes_accessed,
            ),
        )

    try:
        # Resident weights have a constant index_map -> single-buffer them.
        weight_mode = pl.Buffered(1)
        x_mode = pl.Buffered(int(x_buffer_count)) if x_buffer_count else None
        out_row = build(weight_mode, x_mode)(x, w1, b1, w2_row, b2)
    except Exception:
        # Fall back to default double buffering if this Pallas build rejects
        # custom buffer counts (costs one extra VMEM copy of w1; numerics
        # identical).
        out_row = build(None, None)(x, w1, b1, w2_row, b2)

    # Layout plumbing back to the module's (B, 1) output shape (free reshape).
    return out_row.reshape(B, 1)


def init_params(key, input_dim):
    """Deterministic synthetic params with the same shapes as the nn.Module
    (PyTorch Linear weight is (out, in); w1 is stored transposed, w2 as a row)."""
    k1, k2, k3, k4 = jax.random.split(key, 4)
    bound1 = 1.0 / jnp.sqrt(input_dim)
    w1 = jax.random.uniform(k1, (input_dim, HIDDEN), jnp.float32, -bound1, bound1)
    b1 = jax.random.uniform(k2, (1, HIDDEN), jnp.float32, -bound1, bound1)
    bound2 = 1.0 / jnp.sqrt(HIDDEN)
    w2 = jax.random.uniform(k3, (1, HIDDEN), jnp.float32, -bound2, bound2)
    b2 = jax.random.uniform(k4, (1, 1), jnp.float32, -bound2, bound2)
    return w1, b1, w2, b2


def _reference(x, w1, b1, w2_row, b2):
    h = jnp.maximum(
        jnp.dot(x, w1, precision=jax.lax.Precision.HIGHEST) + b1, 0.0)
    return jax.nn.sigmoid(
        jnp.dot(h, w2_row.T, precision=jax.lax.Precision.HIGHEST) + b2)


if __name__ == "__main__":
    key = jax.random.PRNGKey(0)
    kx, kp, kx2 = jax.random.split(key, 3)

    # Small shapes consistent with the module: batch=8, input_dim=32.
    B, INPUT_DIM = 8, 32
    x = jax.random.normal(kx, (B, INPUT_DIM), dtype=jnp.float32)
    w1, b1, w2, b2 = init_params(kp, INPUT_DIM)

    out = jax.block_until_ready(anomaly_detector_forward(x, w1, b1, w2, b2))
    ref = _reference(x, w1, b1, w2, b2)
    assert out.shape == (B, 1)
    assert jnp.allclose(out, ref, atol=1e-5, rtol=1e-5)

    # Exercise the multi-tile path with a ragged tail (Pallas masks the
    # partial last block's reads/writes; no wrapper-side padding pass).
    B2 = 1030
    x2 = jax.random.normal(kx2, (B2, INPUT_DIM), dtype=jnp.float32)
    out2 = jax.block_until_ready(
        anomaly_detector_forward(x2, w1, b1, w2, b2, tb=256))
    ref2 = _reference(x2, w1, b1, w2, b2)
    assert out2.shape == (B2, 1)
    assert jnp.allclose(out2, ref2, atol=1e-4, rtol=1e-4)

    print("KERNEL_OK")
</pallas_src>

<mosaic_0001>
module attributes {stable_mosaic.version = 11 : i64} {
  func.func @_anomaly_mlp_kernel(%arg0: i32, %arg1: memref<8x32xf32, #tpu.memory_space<vmem>>, %arg2: memref<32x64xf32, #tpu.memory_space<vmem>>, %arg3: memref<1x64xf32, #tpu.memory_space<vmem>>, %arg4: memref<1x64xf32, #tpu.memory_space<vmem>>, %arg5: memref<1x1xf32, #tpu.memory_space<vmem>>, %arg6: memref<1x8xf32, #tpu.memory_space<vmem>>) attributes {dimension_semantics = [#tpu.dimension_semantics<parallel>], iteration_bounds = array<i64: 1>, scalar_prefetch = 0 : i64, scratch_operands = 0 : i64, tpu.core_type = #tpu.core_type<tc>, window_params = [{transform_indices = @transform_0, window_bounds = array<i64: 8, 32>}, {pipeline_mode = #tpu.pipeline_mode<synchronous>, transform_indices = @transform_1, window_bounds = array<i64: 32, 64>}, {pipeline_mode = #tpu.pipeline_mode<synchronous>, transform_indices = @transform_2, window_bounds = array<i64: 1, 64>}, {pipeline_mode = #tpu.pipeline_mode<synchronous>, transform_indices = @transform_3, window_bounds = array<i64: 1, 64>}, {pipeline_mode = #tpu.pipeline_mode<synchronous>, transform_indices = @transform_4, window_bounds = array<i64: 1, 1>}, {transform_indices = @transform_5, window_bounds = array<i64: 1, 8>}]} {
    %c0 = arith.constant 0 : index
    %c0_0 = arith.constant 0 : index
    %0 = vector.load %arg1[%c0, %c0_0] : memref<8x32xf32, #tpu.memory_space<vmem>>, vector<8x32xf32>
    %c0_1 = arith.constant 0 : index
    %c0_2 = arith.constant 0 : index
    %1 = vector.load %arg2[%c0_1, %c0_2] : memref<32x64xf32, #tpu.memory_space<vmem>>, vector<32x64xf32>
    %cst = arith.constant dense<0.000000e+00> : vector<8x64xf32>
    %2 = tpu.matmul %0, %1, %cst {dimension_numbers = #tpu.dot_dimension_numbers<[1], [0], [0], [1], [0, 0, 1, 1], [], []>} : vector<8x32xf32>, vector<32x64xf32>, vector<8x64xf32> -> vector<8x64xf32>
    %c0_3 = arith.constant 0 : index
    %c0_4 = arith.constant 0 : index
    %3 = vector.load %arg3[%c0_3, %c0_4] : memref<1x64xf32, #tpu.memory_space<vmem>>, vector<1x64xf32>
    %4 = vector.broadcast %3 : vector<1x64xf32> to vector<8x64xf32>
    %5 = arith.addf %2, %4 : vector<8x64xf32>
    %cst_5 = arith.constant 0.000000e+00 : f32
    %6 = vector.broadcast %cst_5 : f32 to vector<8x64xf32>
    %7 = arith.maximumf %5, %6 : vector<8x64xf32>
    %c0_6 = arith.constant 0 : index
    %c0_7 = arith.constant 0 : index
    %8 = vector.load %arg4[%c0_6, %c0_7] : memref<1x64xf32, #tpu.memory_space<vmem>>, vector<1x64xf32>
    %cst_8 = arith.constant dense<0.000000e+00> : vector<1x8xf32>
    %9 = tpu.matmul %8, %7, %cst_8 {dimension_numbers = #tpu.dot_dimension_numbers<[1], [1], [0], [0], [0, 0, 1, 0], [], []>} : vector<1x64xf32>, vector<8x64xf32>, vector<1x8xf32> -> vector<1x8xf32>
    %c0_9 = arith.constant 0 : index
    %c0_10 = arith.constant 0 : index
    %10 = vector.load %arg5[%c0_9, %c0_10] : memref<1x1xf32, #tpu.memory_space<vmem>>, vector<1x1xf32>
    %11 = vector.broadcast %10 : vector<1x1xf32> to vector<1x8xf32>
    %12 = arith.addf %9, %11 : vector<1x8xf32>
    %13 = arith.negf %12 : vector<1x8xf32>
    %14 = math.exp %13 : vector<1x8xf32>
    %cst_11 = arith.constant 1.000000e+00 : f32
    %15 = vector.broadcast %cst_11 : f32 to vector<1x8xf32>
    %16 = arith.addf %15, %14 : vector<1x8xf32>
    %17 = arith.divf %15, %16 : vector<1x8xf32>
    %c0_12 = arith.constant 0 : index
    %c0_13 = arith.constant 0 : index
    %18 = vector.load %arg6[%c0_12, %c0_13] : memref<1x8xf32, #tpu.memory_space<vmem>>, vector<1x8xf32>
    tpu.vector_store %arg6[%c0_12, %c0_13], %17 {strides = array<i32>} : memref<1x8xf32, #tpu.memory_space<vmem>>, vector<1x8xf32>,
    return
  }
  func.func @transform_0(%arg0: i32) -> (i32, i32) {
    %c0_i32 = arith.constant 0 : i32
    %c0_i32_0 = arith.constant 0 : i32
    return %arg0, %c0_i32 : i32, i32
  }
  func.func @transform_1(%arg0: i32) -> (i32, i32) {
    %c0_i32 = arith.constant 0 : i32
    %c0_i32_0 = arith.constant 0 : i32
    %c0_i32_1 = arith.constant 0 : i32
    return %c0_i32, %c0_i32_0 : i32, i32
  }
  func.func @transform_2(%arg0: i32) -> (i32, i32) {
    %c0_i32 = arith.constant 0 : i32
    %c0_i32_0 = arith.constant 0 : i32
    %c0_i32_1 = arith.constant 0 : i32
    return %c0_i32, %c0_i32_0 : i32, i32
  }
  func.func @transform_3(%arg0: i32) -> (i32, i32) {
    %c0_i32 = arith.constant 0 : i32
    %c0_i32_0 = arith.constant 0 : i32
    %c0_i32_1 = arith.constant 0 : i32
    return %c0_i32, %c0_i32_0 : i32, i32
  }
  func.func @transform_4(%arg0: i32) -> (i32, i32) {
    %c0_i32 = arith.constant 0 : i32
    %c0_i32_0 = arith.constant 0 : i32
    %c0_i32_1 = arith.constant 0 : i32
    return %c0_i32, %c0_i32_0 : i32, i32
  }
  func.func @transform_5(%arg0: i32) -> (i32, i32) {
    %c0_i32 = arith.constant 0 : i32
    %c0_i32_0 = arith.constant 0 : i32
    return %c0_i32, %arg0 : i32, i32
  }
}

module attributes {stable_mosaic.version = 11 : i64} {
  func.func @_anomaly_mlp_kernel(%arg0: i32, %arg1: memref<8x32xf32, #tpu.memory_space<vmem>>, %arg2: memref<32x64xf32, #tpu.memory_space<vmem>>, %arg3: memref<1x64xf32, #tpu.memory_space<vmem>>, %arg4: memref<1x64xf32, #tpu.memory_space<vmem>>, %arg5: memref<1x1xf32, #tpu.memory_space<vmem>>, %arg6: memref<1x8xf32, #tpu.memory_space<vmem>>) attributes {dimension_semantics = [#tpu.dimension_semantics<parallel>], iteration_bounds = array<i64: 1>, scalar_prefetch = 0 : i64, scratch_operands = 0 : i64, tpu.core_type = #tpu.core_type<tc>, window_params = [{transform_indices = @transform_0, window_bounds = array<i64: 8, 32>}, {pipeline_mode = #tpu.pipeline_mode<synchronous>, transform_indices = @transform_1, window_bounds = array<i64: 32, 64>}, {pipeline_mode = #tpu.pipeline_mode<synchronous>, transform_indices = @transform_2, window_bounds = array<i64: 1, 64>}, {pipeline_mode = #tpu.pipeline_mode<synchronous>, transform_indices = @transform_3, window_bounds = array<i64: 1, 64>}, {pipeline_mode = #tpu.pipeline_mode<synchronous>, transform_indices = @transform_4, window_bounds = array<i64: 1, 1>}, {transform_indices = @transform_5, window_bounds = array<i64: 1, 8>}]} {
    %c0 = arith.constant 0 : index
    %c0_0 = arith.constant 0 : index
    %0 = vector.load %arg1[%c0, %c0_0] : memref<8x32xf32, #tpu.memory_space<vmem>>, vector<8x32xf32>
    %c0_1 = arith.constant 0 : index
    %c0_2 = arith.constant 0 : index
    %1 = vector.load %arg2[%c0_1, %c0_2] : memref<32x64xf32, #tpu.memory_space<vmem>>, vector<32x64xf32>
    %cst = arith.constant dense<0.000000e+00> : vector<8x64xf32>
    %2 = tpu.matmul %0, %1, %cst {dimension_numbers = #tpu.dot_dimension_numbers<[1], [0], [0], [1], [0, 0, 1, 1], [], []>} : vector<8x32xf32>, vector<32x64xf32>, vector<8x64xf32> -> vector<8x64xf32>
    %c0_3 = arith.constant 0 : index
    %c0_4 = arith.constant 0 : index
    %3 = vector.load %arg3[%c0_3, %c0_4] : memref<1x64xf32, #tpu.memory_space<vmem>>, vector<1x64xf32>
    %4 = vector.broadcast %3 : vector<1x64xf32> to vector<8x64xf32>
    %5 = arith.addf %2, %4 : vector<8x64xf32>
    %cst_5 = arith.constant 0.000000e+00 : f32
    %6 = vector.broadcast %cst_5 : f32 to vector<8x64xf32>
    %7 = arith.maximumf %5, %6 : vector<8x64xf32>
    %c0_6 = arith.constant 0 : index
    %c0_7 = arith.constant 0 : index
    %8 = vector.load %arg4[%c0_6, %c0_7] : memref<1x64xf32, #tpu.memory_space<vmem>>, vector<1x64xf32>
    %cst_8 = arith.constant dense<0.000000e+00> : vector<1x8xf32>
    %9 = tpu.matmul %8, %7, %cst_8 {dimension_numbers = #tpu.dot_dimension_numbers<[1], [1], [0], [0], [0, 0, 1, 0], [], []>} : vector<1x64xf32>, vector<8x64xf32>, vector<1x8xf32> -> vector<1x8xf32>
    %c0_9 = arith.constant 0 : index
    %c0_10 = arith.constant 0 : index
    %10 = vector.load %arg5[%c0_9, %c0_10] : memref<1x1xf32, #tpu.memory_space<vmem>>, vector<1x1xf32>
    %11 = vector.broadcast %10 : vector<1x1xf32> to vector<1x8xf32>
    %12 = arith.addf %9, %11 : vector<1x8xf32>
    %13 = arith.negf %12 : vector<1x8xf32>
    %14 = math.exp %13 : vector<1x8xf32>
    %cst_11 = arith.constant 1.000000e+00 : f32
    %15 = vector.broadcast %cst_11 : f32 to vector<1x8xf32>
    %16 = arith.addf %15, %14 : vector<1x8xf32>
    %17 = arith.divf %15, %16 : vector<1x8xf32>
    %c0_12 = arith.constant 0 : index
    %c0_13 = arith.constant 0 : index
    %18 = vector.load %arg6[%c0_12, %c0_13] : memref<1x8xf32, #tpu.memory_space<vmem>>, vector<1x8xf32>
    tpu.vector_store %arg6[%c0_12, %c0_13], %17 {strides = array<i32>} : memref<1x8xf32, #tpu.memory_space<vmem>>, vector<1x8xf32>,
    return
  }
  func.func @transform_0(%arg0: i32) -> (i32, i32) {
    %c0_i32 = arith.constant 0 : i32
    %c0_i32_0 = arith.constant 0 : i32
    return %arg0, %c0_i32 : i32, i32
  }
  func.func @transform_1(%arg0: i32) -> (i32, i32) {
    %c0_i32 = arith.constant 0 : i32
    %c0_i32_0 = arith.constant 0 : i32
    %c0_i32_1 = arith.constant 0 : i32
    return %c0_i32, %c0_i32_0 : i32, i32
  }
  func.func @transform_2(%arg0: i32) -> (i32, i32) {
    %c0_i32 = arith.constant 0 : i32
    %c0_i32_0 = arith.constant 0 : i32
    %c0_i32_1 = arith.constant 0 : i32
    return %c0_i32, %c0_i32_0 : i32, i32
  }
  func.func @transform_3(%arg0: i32) -> (i32, i32) {
    %c0_i32 = arith.constant 0 : i32
    %c0_i32_0 = arith.constant 0 : i32
    %c0_i32_1 = arith.constant 0 : i32
    return %c0_i32, %c0_i32_0 : i32, i32
  }
  func.func @transform_4(%arg0: i32) -> (i32, i32) {
    %c0_i32 = arith.constant 0 : i32
    %c0_i32_0 = arith.constant 0 : i32
    %c0_i32_1 = arith.constant 0 : i32
    return %c0_i32, %c0_i32_0 : i32, i32
  }
  func.func @transform_5(%arg0: i32) -> (i32, i32) {
    %c0_i32 = arith.constant 0 : i32
    %c0_i32_0 = arith.constant 0 : i32
    return %c0_i32, %arg0 : i32, i32
  }
}

</mosaic_0001>

<llo_original>
// kernel: tpu_custom_call.1
$region0: #{tpu_custom_call.1}
  #allocation0 [shape = 'u32[]', space=smem, size = 0x4, offset = 0x4, fixed_abs, tag = 'smem constant byte address 0x4 - core index']
  #allocation1 [shape = 'u32[144,128]{1,0:T(1,128)}', space=vmem, size = 0x12000, scoped, tag = 'internal scratch']
  #allocation2 [shape = 'f32[1,1]{1,0:T(1,128)S(1)}', space=vmem, size = 0x200, scoped, tag = 'scoped memory for tpu_custom_call.1']
  %s0 = inlined_call_operand.hbm [shape: f32[8,32], index: 0, kind: input, shape index: {}]
  %s1 = inlined_call_operand.hbm [shape: f32[32,64], index: 1, kind: input, shape index: {}]
  %s2 = inlined_call_operand.vmem [shape: f32[1,64], index: 2, kind: input, shape index: {}]
  %s3 = inlined_call_operand.vmem [shape: f32[1,64], index: 3, kind: input, shape index: {}]
  %s4 = inlined_call_operand.<no memory space> [shape: f32[1,1], index: 4, kind: input, shape index: {}]
  %s5 = inlined_call_operand.hbm [shape: f32[1,8], index: 5, kind: output, shape index: {}]
  %s6 = sld [smem:[#allocation0]]
  $region38: #{tpu_custom_call.1} parent=0
    _
  %s8 = ssub.s32 1, %s6
  %s9 = scalar_select 0, %s8, %s6
  %v10 = vstv %s4
  %11 = vst [vmem:[#allocation2] sm:$0x1] %v10
  $region1: #{tpu_custom_call.1} parent=0
    #allocation3 [shape = 'u8[4096]{0}', space=vmem, size = 0x1000, scoped, tag = 'input window, operand 0, single buffered']
    #allocation4 [shape = 's32[1]{0}', space=sflag, size = 0x4, scoped, tag = 'scoped memory for tpu_custom_call.1']
    #allocation5 [shape = 's32[1]{0}', space=sflag, size = 0x4, scoped, tag = 'scoped memory for tpu_custom_call.1']
    #allocation6 [shape = 'u8[16384]{0}', space=vmem, size = 0x4000, scoped, tag = 'input window, operand 1, single buffered']
    #allocation7 [shape = 's32[1]{0}', space=sflag, size = 0x4, scoped, tag = 'scoped memory for tpu_custom_call.1']
    #allocation8 [shape = 'u8[512]{0}', space=vmem, size = 0x400, scoped, tag = 'output window, operand 0, single buffered']
    %12 = vsyncpa [#allocation4], 0
    %13 = vsyncpa [#allocation7], 0
    %14 = vsyncpa [#allocation5], 0
    // Predicated region
    $region2: #{tpu_custom_call.1} parent=1 // pred_check
      _
    $region3: #{tpu_custom_call.1} parent=1 // pred_check_branch
      %16 = sbr.rel (0) target = $region5
    $region4: #{tpu_custom_call.1} parent=1 // pred_region
      %s18 = ssub.s32 128, 128
      %19 = vsyncadd [#allocation4], %s18
      %s21 = sshll.u32 [#allocation3], 4
      %s22 = int_to_ptr.vmem [resolvable:$true] %s21
      %24 = dma.hbm_to_vmem [thread:$0]  %s0, 128, %s22, [#allocation4]
    $region5: #{tpu_custom_call.1} parent=1 // pred_fallthru
      _
    // Predicated region
    $region6: #{tpu_custom_call.1} parent=1 // pred_check
      _
    $region7: #{tpu_custom_call.1} parent=1 // pred_check_branch
      %26 = sbr.rel (0) target = $region9
    $region8: #{tpu_custom_call.1} parent=1 // pred_region
      %s28 = ssub.s32 512, 512
      %29 = vsyncadd [#allocation7], %s28
      %s30 = sshll.u32 [#allocation6], 4
      %s31 = int_to_ptr.vmem [resolvable:$true] %s30
      %36 = dma.hbm_to_vmem [thread:$0]  %s1, 512, %s31, [#allocation7], 128, 128, 8
    $region9: #{tpu_custom_call.1} parent=1 // pred_fallthru
      _
    // Predicated region
    $region10: #{tpu_custom_call.1} parent=1 // pred_check
      _
    $region11: #{tpu_custom_call.1} parent=1 // pred_check_branch
      %38 = sbr.rel (0) target = $region13
    $region12: #{tpu_custom_call.1} parent=1 // pred_region
      _
    $region13: #{tpu_custom_call.1} parent=1 // pred_fallthru
      _
    // Predicated region
    $region14: #{tpu_custom_call.1} parent=1 // pred_check
      _
    $region15: #{tpu_custom_call.1} parent=1 // pred_check_branch
      %40 = sbr.rel (0) target = $region17
    $region16: #{tpu_custom_call.1} parent=1 // pred_region
      _
    $region17: #{tpu_custom_call.1} parent=1 // pred_fallthru
      _
    // Predicated region
    $region18: #{tpu_custom_call.1} parent=1 // pred_check
      _
    $region19: #{tpu_custom_call.1} parent=1 // pred_check_branch
      %42 = sbr.rel (0) target = $region21
    $region20: #{tpu_custom_call.1} parent=1 // pred_region
      _
    $region21: #{tpu_custom_call.1} parent=1 // pred_fallthru
      _
    // Predicated region
    $region22: #{tpu_custom_call.1} parent=1 // pred_check
      _
    $region23: #{tpu_custom_call.1} parent=1 // pred_check_branch
      %44 = sbr.rel (0) target = $region25
    $region24: #{tpu_custom_call.1} parent=1 // pred_region
      %45 = dma.done [#allocation4], 128
    $region25: #{tpu_custom_call.1} parent=1 // pred_fallthru
      _
    // Predicated region
    $region26: #{tpu_custom_call.1} parent=1 // pred_check
      _
    $region27: #{tpu_custom_call.1} parent=1 // pred_check_branch
      %47 = sbr.rel (0) target = $region29
    $region28: #{tpu_custom_call.1} parent=1 // pred_region
      %48 = dma.done [#allocation7], 512
    $region29: #{tpu_custom_call.1} parent=1 // pred_fallthru
      _
    %v49 = vld [vmem:[#allocation3] sm:$0xff]
    %v50 = vld [vmem:[#allocation6] sm:$0xff]
    %v51 = vld [vmem:[#allocation6 + $0x8] sm:$0xff]
    %v52 = vld [vmem:[#allocation6 + $0x10] sm:$0xff]
    %v53 = vld [vmem:[#allocation6 + $0x18] sm:$0xff]
    %v54 = vld [vmem:[%s2] sm:$0x1]
    %v56 = vlaneseq
    %v57 = vshrl.u32 %v56, 7
    %v58 = vsub.s32 0, %v57
    %v59 = vrot.slane %v54, %v58
    %vm61 = vcmask 261120
    %v63 = vsel %vm61, %v49, 0
    %65 = vmatprep.subr.mxu0 0.0
    %66 = vmatpush1.msra.mxu0 0.0
    %67 = vmatprep.subr.mxu0 0.0
    %68 = vmatpush1.msra.mxu0 0.0
    %69 = vmatprep.subr.mxu0 0.0
    %70 = vmatpush1.msra.mxu0 0.0
    %71 = vmatprep.subr.mxu0 0.0
    %72 = vmatpush1.msra.mxu0 0.0
    %73 = vmatprep.subr.mxu0 0.0
    %74 = vmatpush1.msra.mxu0 0.0
    %75 = vmatprep.subr.mxu0 0.0
    %76 = vmatpush1.msra.mxu0 0.0
    %77 = vmatprep.subr.mxu0 0.0
    %78 = vmatpush1.msra.mxu0 0.0
    %79 = vmatprep.subr.mxu0 0.0
    %80 = vmatpush1.msra.mxu0 0.0
    %81 = vmatprep.subr.mxu0 0.0
    %82 = vmatpush1.msra.mxu0 0.0
    %83 = vmatprep.subr.mxu0 0.0
    %84 = vmatpush1.msra.mxu0 0.0
    %85 = vmatprep.subr.mxu0 0.0
    %86 = vmatpush1.msra.mxu0 0.0
    %87 = vmatprep.subr.mxu0 0.0
    %88 = vmatpush1.msra.mxu0 0.0
    %89 = vmatprep.subr.mxu0 0.0
    %90 = vmatpush1.msra.mxu0 %v53
    %91 = vmatprep.subr.mxu0 0.0
    %92 = vmatpush1.msra.mxu0 %v52
    %93 = vmatprep.subr.mxu0 0.0
    %94 = vmatpush1.msra.mxu0 %v51
    %95 = vmatprep.subr.mxu0 0.0
    %96 = vmatpush1.msra.mxu0 %v50
    %97 = vmatprep.subr.mxu0 0.0
    %98 = vmatpush2.msra.mxu0 0.0
    %99 = vmatprep.subr.mxu0 0.0
    %100 = vmatpush2.msra.mxu0 0.0
    %101 = vmatprep.subr.mxu0 0.0
    %102 = vmatpush2.msra.mxu0 0.0
    %103 = vmatprep.subr.mxu0 0.0
    %104 = vmatpush2.msra.mxu0 0.0
    %105 = vmatprep.subr.mxu0 0.0
    %106 = vmatpush2.msra.mxu0 0.0
    %107 = vmatprep.subr.mxu0 0.0
    %108 = vmatpush2.msra.mxu0 0.0
    %109 = vmatprep.subr.mxu0 0.0
    %110 = vmatpush2.msra.mxu0 0.0
    %111 = vmatprep.subr.mxu0 0.0
    %112 = vmatpush2.msra.mxu0 0.0
    %113 = vmatprep.subr.mxu0 0.0
    %114 = vmatpush2.msra.mxu0 0.0
    %115 = vmatprep.subr.mxu0 0.0
    %116 = vmatpush2.msra.mxu0 0.0
    %117 = vmatprep.subr.mxu0 0.0
    %118 = vmatpush2.msra.mxu0 0.0
    %119 = vmatprep.subr.mxu0 0.0
    %120 = vmatpush2.msra.mxu0 0.0
    %121 = vmatprep.subr.mxu0 0.0
    %122 = vmatpush2.msra.mxu0 0.0
    %123 = vmatprep.subr.mxu0 0.0
    %124 = vmatpush2.msra.mxu0 0.0
    %125 = vmatprep.subr.mxu0 0.0
    %126 = vmatpush2.msra.mxu0 0.0
    %127 = vmatprep.subr.mxu0 0.0
    %128 = vmatpush2.msra.mxu0 0.0
    %129 = vmatprep.mubr.f32.mxu0 0.0
    %130 = vmatmul.mubr.f32.gmra.mxu0 %v63
    %v131 = vpop.f32.mrf.mxu0
    %v132 = vadd.f32 %v59, %v131
    %v133 = vpop.f32.mrf.mxu0
    %134 = vdwg.mxu0
    %v135 = vmax.f32 %v132, 0.0
    %v136 = vld [vmem:[%s3] sm:$0x1]
    %v137 = vld [vmem:[#allocation2] sm:$0x1]
    %139 = vset.pattern.permute.xlu0 0
    %140 = vperm.xlu0 %139, %v137
    %v141 = vpop.permute.xlu0 %140
    %v143 = vlaneseq
    %v144 = vshrl.u32 %v143, 7
    %v145 = vsub.s32 0, %v144
    %v146 = vrot.slane %v141, %v145
    %vm147 = vcmask 523264
    %v149 = vsel %vm147, %v136, 0
    %v152 = vsel %vm147, %v135, 0
    %154 = vmatprep.subr.mxu0 0.0
    %155 = vmatpush1.xpose.msra.mxu0 0.0
    %156 = vmatprep.subr.mxu0 0.0
    %157 = vmatpush1.xpose.msra.mxu0 0.0
    %158 = vmatprep.subr.mxu0 0.0
    %159 = vmatpush1.xpose.msra.mxu0 0.0
    %160 = vmatprep.subr.mxu0 0.0
    %161 = vmatpush1.xpose.msra.mxu0 0.0
    %162 = vmatprep.subr.mxu0 0.0
    %163 = vmatpush1.xpose.msra.mxu0 0.0
    %164 = vmatprep.subr.mxu0 0.0
    %165 = vmatpush1.xpose.msra.mxu0 0.0
    %166 = vmatprep.subr.mxu0 0.0
    %167 = vmatpush1.xpose.msra.mxu0 0.0
    %168 = vmatprep.subr.mxu0 0.0
    %169 = vmatpush1.xpose.msra.mxu0 0.0
    %170 = vmatprep.subr.mxu0 0.0
    %171 = vmatpush1.xpose.msra.mxu0 0.0
    %172 = vmatprep.subr.mxu0 0.0
    %173 = vmatpush1.xpose.msra.mxu0 0.0
    %174 = vmatprep.subr.mxu0 0.0
    %175 = vmatpush1.xpose.msra.mxu0 0.0
    %176 = vmatprep.subr.mxu0 0.0
    %177 = vmatpush1.xpose.msra.mxu0 0.0
    %178 = vmatprep.subr.mxu0 0.0
    %179 = vmatpush1.xpose.msra.mxu0 0.0
    %180 = vmatprep.subr.mxu0 0.0
    %181 = vmatpush1.xpose.msra.mxu0 0.0
    %182 = vmatprep.subr.mxu0 0.0
    %183 = vmatpush1.xpose.msra.mxu0 0.0
    %184 = vmatprep.subr.mxu0 0.0
    %185 = vmatpush1.xpose.msra.mxu0 %v152
    %186 = vmatprep.subr.mxu0 0.0
    %187 = vmatpush2.xpose.msra.mxu0 0.0
    %188 = vmatprep.subr.mxu0 0.0
    %189 = vmatpush2.xpose.msra.mxu0 0.0
    %190 = vmatprep.subr.mxu0 0.0
    %191 = vmatpush2.xpose.msra.mxu0 0.0
    %192 = vmatprep.subr.mxu0 0.0
    %193 = vmatpush2.xpose.msra.mxu0 0.0
    %194 = vmatprep.subr.mxu0 0.0
    %195 = vmatpush2.xpose.msra.mxu0 0.0
    %196 = vmatprep.subr.mxu0 0.0
    %197 = vmatpush2.xpose.msra.mxu0 0.0
    %198 = vmatprep.subr.mxu0 0.0
    %199 = vmatpush2.xpose.msra.mxu0 0.0
    %200 = vmatprep.subr.mxu0 0.0
    %201 = vmatpush2.xpose.msra.mxu0 0.0
    %202 = vmatprep.subr.mxu0 0.0
    %203 = vmatpush2.xpose.msra.mxu0 0.0
    %204 = vmatprep.subr.mxu0 0.0
    %205 = vmatpush2.xpose.msra.mxu0 0.0
    %206 = vmatprep.subr.mxu0 0.0
    %207 = vmatpush2.xpose.msra.mxu0 0.0
    %208 = vmatprep.subr.mxu0 0.0
    %209 = vmatpush2.xpose.msra.mxu0 0.0
    %210 = vmatprep.subr.mxu0 0.0
    %211 = vmatpush2.xpose.msra.mxu0 0.0
    %212 = vmatprep.subr.mxu0 0.0
    %213 = vmatpush2.xpose.msra.mxu0 0.0
    %214 = vmatprep.subr.mxu0 0.0
    %215 = vmatpush2.xpose.msra.mxu0 0.0
    %216 = vmatprep.subr.mxu0 0.0
    %217 = vmatpush2.xpose.msra.mxu0 0.0
    %218 = vmatprep.mubr.f32.mxu0 0.0
    %219 = vmatmul.mubr.f32.gmra.mxu0 %v149
    %v220 = vpop.f32.mrf.mxu0
    %v221 = vadd.f32 %v146, %v220
    %v222 = vpop.f32.mrf.mxu0
    %223 = vdwg.mxu0
    %v224 = vxor.u32 %v221, 2147483648
    %v225 = vmul.f32 %v224, 1.442695
    %v226 = vpow.pop %v225
    %v227 = vadd.f32 %v226, 1.0
    %v228 = vrcp.pop %v227
    %v229 = vmul.f32 1.0, %v228
    %vm230 = vcmask 57344
    %231 = vst.msk [vmem:[#allocation8] sm:$0x1] %vm230, %v229
    // Predicated region
    $region30: #{tpu_custom_call.1} parent=1 // pred_check
      _
    $region31: #{tpu_custom_call.1} parent=1 // pred_check_branch
      %233 = sbr.rel (0) target = $region33
    $region32: #{tpu_custom_call.1} parent=1 // pred_region
      %s235 = ssub.s32 16, 16
      %236 = vsyncadd [#allocation5], %s235
      %s238 = sshll.u32 [#allocation8], 4
      %s239 = int_to_ptr.vmem [resolvable:$true] %s238
      %241 = dma.vmem_to_hbm [thread:$0]  %s239, 16, %s5, [#allocation5]
    $region33: #{tpu_custom_call.1} parent=1 // pred_fallthru
      _
    // Predicated region
    $region34: #{tpu_custom_call.1} parent=1 // pred_check
      _
    $region35: #{tpu_custom_call.1} parent=1 // pred_check_branch
      %243 = sbr.rel (0) target = $region37
    $region36: #{tpu_custom_call.1} parent=1 // pred_region
      %244 = dma.done [#allocation5], 16
    $region37: #{tpu_custom_call.1} parent=1 // pred_fallthru
      _
    %245 = vsyncpa [#allocation4], 1
    %246 = vsyncpa [#allocation7], 1
    %247 = vsyncpa [#allocation5], 1

// kernel: tpu_custom_call.1
$region0: #{tpu_custom_call.1}
  #allocation0 [shape = 'u32[]', space=smem, size = 0x4, offset = 0x4, fixed_abs, tag = 'smem constant byte address 0x4 - core index']
  #allocation1 [shape = 'u32[144,128]{1,0:T(1,128)}', space=vmem, size = 0x12000, scoped, tag = 'internal scratch']
  #allocation2 [shape = 'f32[1,1]{1,0:T(1,128)S(1)}', space=vmem, size = 0x200, scoped, tag = 'scoped memory for tpu_custom_call.1']
  %s0 = inlined_call_operand.hbm [shape: f32[8,32], index: 0, kind: input, shape index: {}]
  %s1 = inlined_call_operand.hbm [shape: f32[32,64], index: 1, kind: input, shape index: {}]
  %s2 = inlined_call_operand.vmem [shape: f32[1,64], index: 2, kind: input, shape index: {}]
  %s3 = inlined_call_operand.vmem [shape: f32[1,64], index: 3, kind: input, shape index: {}]
  %s4 = inlined_call_operand.<no memory space> [shape: f32[1,1], index: 4, kind: input, shape index: {}]
  %s5 = inlined_call_operand.hbm [shape: f32[1,8], index: 5, kind: output, shape index: {}]
  %s6 = sld [smem:[#allocation0]]
  $region38: #{tpu_custom_call.1} parent=0
    _
  %s8 = ssub.s32 1, %s6
  %s9 = scalar_select 0, %s8, %s6
  %v10 = vstv %s4
  %11 = vst [vmem:[#allocation2] sm:$0x1] %v10
  $region1: #{tpu_custom_call.1} parent=0
    #allocation3 [shape = 'u8[4096]{0}', space=vmem, size = 0x1000, scoped, tag = 'input window, operand 0, single buffered']
    #allocation4 [shape = 's32[1]{0}', space=sflag, size = 0x4, scoped, tag = 'scoped memory for tpu_custom_call.1']
    #allocation5 [shape = 's32[1]{0}', space=sflag, size = 0x4, scoped, tag = 'scoped memory for tpu_custom_call.1']
    #allocation6 [shape = 'u8[16384]{0}', space=vmem, size = 0x4000, scoped, tag = 'input window, operand 1, single buffered']
    #allocation7 [shape = 's32[1]{0}', space=sflag, size = 0x4, scoped, tag = 'scoped memory for tpu_custom_call.1']
    #allocation8 [shape = 'u8[512]{0}', space=vmem, size = 0x400, scoped, tag = 'output window, operand 0, single buffered']
    %12 = vsyncpa [#allocation4], 0
    %13 = vsyncpa [#allocation7], 0
    %14 = vsyncpa [#allocation5], 0
    // Predicated region
    $region2: #{tpu_custom_call.1} parent=1 // pred_check
      _
    $region3: #{tpu_custom_call.1} parent=1 // pred_check_branch
      %16 = sbr.rel (0) target = $region5
    $region4: #{tpu_custom_call.1} parent=1 // pred_region
      %s18 = ssub.s32 128, 128
      %19 = vsyncadd [#allocation4], %s18
      %s21 = sshll.u32 [#allocation3], 4
      %s22 = int_to_ptr.vmem [resolvable:$true] %s21
      %24 = dma.hbm_to_vmem [thread:$0]  %s0, 128, %s22, [#allocation4]
    $region5: #{tpu_custom_call.1} parent=1 // pred_fallthru
      _
    // Predicated region
    $region6: #{tpu_custom_call.1} parent=1 // pred_check
      _
    $region7: #{tpu_custom_call.1} parent=1 // pred_check_branch
      %26 = sbr.rel (0) target = $region9
    $region8: #{tpu_custom_call.1} parent=1 // pred_region
      %s28 = ssub.s32 512, 512
      %29 = vsyncadd [#allocation7], %s28
      %s30 = sshll.u32 [#allocation6], 4
      %s31 = int_to_ptr.vmem [resolvable:$true] %s30
      %36 = dma.hbm_to_vmem [thread:$0]  %s1, 512, %s31, [#allocation7], 128, 128, 8
    $region9: #{tpu_custom_call.1} parent=1 // pred_fallthru
      _
    // Predicated region
    $region10: #{tpu_custom_call.1} parent=1 // pred_check
      _
    $region11: #{tpu_custom_call.1} parent=1 // pred_check_branch
      %38 = sbr.rel (0) target = $region13
    $region12: #{tpu_custom_call.1} parent=1 // pred_region
      _
    $region13: #{tpu_custom_call.1} parent=1 // pred_fallthru
      _
    // Predicated region
    $region14: #{tpu_custom_call.1} parent=1 // pred_check
      _
    $region15: #{tpu_custom_call.1} parent=1 // pred_check_branch
      %40 = sbr.rel (0) target = $region17
    $region16: #{tpu_custom_call.1} parent=1 // pred_region
      _
    $region17: #{tpu_custom_call.1} parent=1 // pred_fallthru
      _
    // Predicated region
    $region18: #{tpu_custom_call.1} parent=1 // pred_check
      _
    $region19: #{tpu_custom_call.1} parent=1 // pred_check_branch
      %42 = sbr.rel (0) target = $region21
    $region20: #{tpu_custom_call.1} parent=1 // pred_region
      _
    $region21: #{tpu_custom_call.1} parent=1 // pred_fallthru
      _
    // Predicated region
    $region22: #{tpu_custom_call.1} parent=1 // pred_check
      _
    $region23: #{tpu_custom_call.1} parent=1 // pred_check_branch
      %44 = sbr.rel (0) target = $region25
    $region24: #{tpu_custom_call.1} parent=1 // pred_region
      %45 = dma.done [#allocation4], 128
    $region25: #{tpu_custom_call.1} parent=1 // pred_fallthru
      _
    // Predicated region
    $region26: #{tpu_custom_call.1} parent=1 // pred_check
      _
    $region27: #{tpu_custom_call.1} parent=1 // pred_check_branch
      %47 = sbr.rel (0) target = $region29
    $region28: #{tpu_custom_call.1} parent=1 // pred_region
      %48 = dma.done [#allocation7], 512
    $region29: #{tpu_custom_call.1} parent=1 // pred_fallthru
      _
    %v49 = vld [vmem:[#allocation3] sm:$0xff]
    %v50 = vld [vmem:[#allocation6] sm:$0xff]
    %v51 = vld [vmem:[#allocation6 + $0x8] sm:$0xff]
    %v52 = vld [vmem:[#allocation6 + $0x10] sm:$0xff]
    %v53 = vld [vmem:[#allocation6 + $0x18] sm:$0xff]
    %v54 = vld [vmem:[%s2] sm:$0x1]
    %v56 = vlaneseq
    %v57 = vshrl.u32 %v56, 7
    %v58 = vsub.s32 0, %v57
    %v59 = vrot.slane %v54, %v58
    %vm61 = vcmask 261120
    %v63 = vsel %vm61, %v49, 0
    %65 = vmatprep.subr.mxu0 0.0
    %66 = vmatpush1.msra.mxu0 0.0
    %67 = vmatprep.subr.mxu0 0.0
    %68 = vmatpush1.msra.mxu0 0.0
    %69 = vmatprep.subr.mxu0 0.0
    %70 = vmatpush1.msra.mxu0 0.0
    %71 = vmatprep.subr.mxu0 0.0
    %72 = vmatpush1.msra.mxu0 0.0
    %73 = vmatprep.subr.mxu0 0.0
    %74 = vmatpush1.msra.mxu0 0.0
    %75 = vmatprep.subr.mxu0 0.0
    %76 = vmatpush1.msra.mxu0 0.0
    %77 = vmatprep.subr.mxu0 0.0
    %78 = vmatpush1.msra.mxu0 0.0
    %79 = vmatprep.subr.mxu0 0.0
    %80 = vmatpush1.msra.mxu0 0.0
    %81 = vmatprep.subr.mxu0 0.0
    %82 = vmatpush1.msra.mxu0 0.0
    %83 = vmatprep.subr.mxu0 0.0
    %84 = vmatpush1.msra.mxu0 0.0
    %85 = vmatprep.subr.mxu0 0.0
    %86 = vmatpush1.msra.mxu0 0.0
    %87 = vmatprep.subr.mxu0 0.0
    %88 = vmatpush1.msra.mxu0 0.0
    %89 = vmatprep.subr.mxu0 0.0
    %90 = vmatpush1.msra.mxu0 %v53
    %91 = vmatprep.subr.mxu0 0.0
    %92 = vmatpush1.msra.mxu0 %v52
    %93 = vmatprep.subr.mxu0 0.0
    %94 = vmatpush1.msra.mxu0 %v51
    %95 = vmatprep.subr.mxu0 0.0
    %96 = vmatpush1.msra.mxu0 %v50
    %97 = vmatprep.subr.mxu0 0.0
    %98 = vmatpush2.msra.mxu0 0.0
    %99 = vmatprep.subr.mxu0 0.0
    %100 = vmatpush2.msra.mxu0 0.0
    %101 = vmatprep.subr.mxu0 0.0
    %102 = vmatpush2.msra.mxu0 0.0
    %103 = vmatprep.subr.mxu0 0.0
    %104 = vmatpush2.msra.mxu0 0.0
    %105 = vmatprep.subr.mxu0 0.0
    %106 = vmatpush2.msra.mxu0 0.0
    %107 = vmatprep.subr.mxu0 0.0
    %108 = vmatpush2.msra.mxu0 0.0
    %109 = vmatprep.subr.mxu0 0.0
    %110 = vmatpush2.msra.mxu0 0.0
    %111 = vmatprep.subr.mxu0 0.0
    %112 = vmatpush2.msra.mxu0 0.0
    %113 = vmatprep.subr.mxu0 0.0
    %114 = vmatpush2.msra.mxu0 0.0
    %115 = vmatprep.subr.mxu0 0.0
    %116 = vmatpush2.msra.mxu0 0.0
    %117 = vmatprep.subr.mxu0 0.0
    %118 = vmatpush2.msra.mxu0 0.0
    %119 = vmatprep.subr.mxu0 0.0
    %120 = vmatpush2.msra.mxu0 0.0
    %121 = vmatprep.subr.mxu0 0.0
    %122 = vmatpush2.msra.mxu0 0.0
    %123 = vmatprep.subr.mxu0 0.0
    %124 = vmatpush2.msra.mxu0 0.0
    %125 = vmatprep.subr.mxu0 0.0
    %126 = vmatpush2.msra.mxu0 0.0
    %127 = vmatprep.subr.mxu0 0.0
    %128 = vmatpush2.msra.mxu0 0.0
    %129 = vmatprep.mubr.f32.mxu0 0.0
    %130 = vmatmul.mubr.f32.gmra.mxu0 %v63
    %v131 = vpop.f32.mrf.mxu0
    %v132 = vadd.f32 %v59, %v131
    %v133 = vpop.f32.mrf.mxu0
    %134 = vdwg.mxu0
    %v135 = vmax.f32 %v132, 0.0
    %v136 = vld [vmem:[%s3] sm:$0x1]
    %v137 = vld [vmem:[#allocation2] sm:$0x1]
    %139 = vset.pattern.permute.xlu0 0
    %140 = vperm.xlu0 %139, %v137
    %v141 = vpop.permute.xlu0 %140
    %v143 = vlaneseq
    %v144 = vshrl.u32 %v143, 7
    %v145 = vsub.s32 0, %v144
    %v146 = vrot.slane %v141, %v145
    %vm147 = vcmask 523264
    %v149 = vsel %vm147, %v136, 0
    %v152 = vsel %vm147, %v135, 0
    %154 = vmatprep.subr.mxu0 0.0
    %155 = vmatpush1.xpose.msra.mxu0 0.0
    %156 = vmatprep.subr.mxu0 0.0
    %157 = vmatpush1.xpose.msra.mxu0 0.0
    %158 = vmatprep.subr.mxu0 0.0
    %159 = vmatpush1.xpose.msra.mxu0 0.0
    %160 = vmatprep.subr.mxu0 0.0
    %161 = vmatpush1.xpose.msra.mxu0 0.0
    %162 = vmatprep.subr.mxu0 0.0
    %163 = vmatpush1.xpose.msra.mxu0 0.0
    %164 = vmatprep.subr.mxu0 0.0
    %165 = vmatpush1.xpose.msra.mxu0 0.0
    %166 = vmatprep.subr.mxu0 0.0
    %167 = vmatpush1.xpose.msra.mxu0 0.0
    %168 = vmatprep.subr.mxu0 0.0
    %169 = vmatpush1.xpose.msra.mxu0 0.0
    %170 = vmatprep.subr.mxu0 0.0
    %171 = vmatpush1.xpose.msra.mxu0 0.0
    %172 = vmatprep.subr.mxu0 0.0
    %173 = vmatpush1.xpose.msra.mxu0 0.0
    %174 = vmatprep.subr.mxu0 0.0
    %175 = vmatpush1.xpose.msra.mxu0 0.0
    %176 = vmatprep.subr.mxu0 0.0
    %177 = vmatpush1.xpose.msra.mxu0 0.0
    %178 = vmatprep.subr.mxu0 0.0
    %179 = vmatpush1.xpose.msra.mxu0 0.0
    %180 = vmatprep.subr.mxu0 0.0
    %181 = vmatpush1.xpose.msra.mxu0 0.0
    %182 = vmatprep.subr.mxu0 0.0
    %183 = vmatpush1.xpose.msra.mxu0 0.0
    %184 = vmatprep.subr.mxu0 0.0
    %185 = vmatpush1.xpose.msra.mxu0 %v152
    %186 = vmatprep.subr.mxu0 0.0
    %187 = vmatpush2.xpose.msra.mxu0 0.0
    %188 = vmatprep.subr.mxu0 0.0
    %189 = vmatpush2.xpose.msra.mxu0 0.0
    %190 = vmatprep.subr.mxu0 0.0
    %191 = vmatpush2.xpose.msra.mxu0 0.0
    %192 = vmatprep.subr.mxu0 0.0
    %193 = vmatpush2.xpose.msra.mxu0 0.0
    %194 = vmatprep.subr.mxu0 0.0
    %195 = vmatpush2.xpose.msra.mxu0 0.0
    %196 = vmatprep.subr.mxu0 0.0
    %197 = vmatpush2.xpose.msra.mxu0 0.0
    %198 = vmatprep.subr.mxu0 0.0
    %199 = vmatpush2.xpose.msra.mxu0 0.0
    %200 = vmatprep.subr.mxu0 0.0
    %201 = vmatpush2.xpose.msra.mxu0 0.0
    %202 = vmatprep.subr.mxu0 0.0
    %203 = vmatpush2.xpose.msra.mxu0 0.0
    %204 = vmatprep.subr.mxu0 0.0
    %205 = vmatpush2.xpose.msra.mxu0 0.0
    %206 = vmatprep.subr.mxu0 0.0
    %207 = vmatpush2.xpose.msra.mxu0 0.0
    %208 = vmatprep.subr.mxu0 0.0
    %209 = vmatpush2.xpose.msra.mxu0 0.0
    %210 = vmatprep.subr.mxu0 0.0
    %211 = vmatpush2.xpose.msra.mxu0 0.0
    %212 = vmatprep.subr.mxu0 0.0
    %213 = vmatpush2.xpose.msra.mxu0 0.0
    %214 = vmatprep.subr.mxu0 0.0
    %215 = vmatpush2.xpose.msra.mxu0 0.0
    %216 = vmatprep.subr.mxu0 0.0
    %217 = vmatpush2.xpose.msra.mxu0 0.0
    %218 = vmatprep.mubr.f32.mxu0 0.0
    %219 = vmatmul.mubr.f32.gmra.mxu0 %v149
    %v220 = vpop.f32.mrf.mxu0
    %v221 = vadd.f32 %v146, %v220
    %v222 = vpop.f32.mrf.mxu0
    %223 = vdwg.mxu0
    %v224 = vxor.u32 %v221, 2147483648
    %v225 = vmul.f32 %v224, 1.442695
    %v226 = vpow.pop %v225
    %v227 = vadd.f32 %v226, 1.0
    %v228 = vrcp.pop %v227
    %v229 = vmul.f32 1.0, %v228
    %vm230 = vcmask 57344
    %231 = vst.msk [vmem:[#allocation8] sm:$0x1] %vm230, %v229
    // Predicated region
    $region30: #{tpu_custom_call.1} parent=1 // pred_check
      _
    $region31: #{tpu_custom_call.1} parent=1 // pred_check_branch
      %233 = sbr.rel (0) target = $region33
    $region32: #{tpu_custom_call.1} parent=1 // pred_region
      %s235 = ssub.s32 16, 16
      %236 = vsyncadd [#allocation5], %s235
      %s238 = sshll.u32 [#allocation8], 4
      %s239 = int_to_ptr.vmem [resolvable:$true] %s238
      %241 = dma.vmem_to_hbm [thread:$0]  %s239, 16, %s5, [#allocation5]
    $region33: #{tpu_custom_call.1} parent=1 // pred_fallthru
      _
    // Predicated region
    $region34: #{tpu_custom_call.1} parent=1 // pred_check
      _
    $region35: #{tpu_custom_call.1} parent=1 // pred_check_branch
      %243 = sbr.rel (0) target = $region37
    $region36: #{tpu_custom_call.1} parent=1 // pred_region
      %244 = dma.done [#allocation5], 16
    $region37: #{tpu_custom_call.1} parent=1 // pred_fallthru
      _
    %245 = vsyncpa [#allocation4], 1
    %246 = vsyncpa [#allocation7], 1
    %247 = vsyncpa [#allocation5], 1

</llo_original>
